<compile_context>
chip_gen: v6e
topology: v6e:2x2x1
jax: 0.10.0
libtpu: 0.0.40
codegen_flags: <defaults>
</compile_context>

<pallas_src>
import jax
import jax.numpy as jnp
from jax import lax
from jax.experimental import pallas as pl
from jax.experimental.pallas import tpu as pltpu


_MAX_BLOCK_BYTES = 4 * 1024 * 1024  # per-input block budget


def _cdiv(a, b):
    return -(-a // b)


def _round_up(x, m):
    return _cdiv(x, m) * m


def _make_kernel(*, tr, hw, out_w, r, need_mask, use_weight):
    def kernel(*refs):
        if use_weight:
            w_ref, p_ref, g_ref, out_ref = refs
        else:
            p_ref, g_ref, out_ref = refs

        # (tr, hw) block, compute in f32.
        diff = p_ref[...].astype(jnp.float32) - g_ref[...].astype(jnp.float32)

        if use_weight:
            w = w_ref[...].astype(jnp.float32)      # (tr, 1) block, pipelined
            diff = diff * w                          # broadcast over lanes

        sq = diff * diff                             # (tr, hw)

        if need_mask:
            i = pl.program_id(0)
            rows = i * tr + lax.broadcasted_iota(jnp.int32, (tr, 1), 0)
            sq = jnp.where(rows < r, sq, jnp.float32(0.0))

        # Fold rows in groups of 8.  Reshape (tr,hw)->(tr//8,8,hw) keeps the
        # lane dim and maps row groups to the outer dim (free), so sum(axis=0)
        # is pure cross-vreg VPU adds.
        part = sq.reshape(tr // 8, 8, hw).sum(axis=0)          # (8, hw)

        # Fold lanes in groups of 128 via static (8,128) vreg-tile slices —
        # VPU adds only, no lane reshuffle.  Gives a lane-dense 128-wide store.
        if out_w != hw:
            acc = part[:, 0:128]
            for c in range(1, hw // 128):
                acc = acc + part[:, c * 128:(c + 1) * 128]
            part = acc                                          # (8, 128)

        out_ref[...] = part[jnp.newaxis]                        # (1, 8, out_w)

    return kernel


def joints_mse_loss(output, target, target_weight=None, use_target_weight=True):
    """Pallas implementation of JointsMSELoss.forward.

    output, target: (B, J, H, W); target_weight: (B, J, 1).
    Returns a scalar float32 loss.
    """
    B, J, H, W = output.shape
    HW = H * W
    R = B * J

    # Contiguous (copy-free) reshapes — no transpose / extra HBM pass.
    pred = output.reshape(R, HW)
    gt = target.reshape(R, HW)

    itemsize = jnp.dtype(output.dtype).itemsize
    pack = max(8, 32 // itemsize)          # sublane pack: 8 f32 / 16 bf16 / 32 int8

    # Block-count sizing: per-block memory budget first, then force an even,
    # >=2-block grid (both v7x TensorCores, balanced halves), but never more
    # blocks than pack-row groups (no fully-empty / fully-OOB blocks).
    nb = _cdiv(R * HW * itemsize, _MAX_BLOCK_BYTES)
    nb = max(2, _round_up(nb, 2))
    nb = max(1, min(nb, _cdiv(R, pack)))
    tr = _round_up(_cdiv(R, nb), pack)
    num_blocks = _cdiv(R, tr)
    r_pad = num_blocks * tr
    need_mask = r_pad != R

    # Lane fold only when HW is a clean multiple of 128 (typical heatmaps).
    out_w = 128 if (HW % 128 == 0) else HW
    # TODO(synk): for HW not a multiple of 128, reflatten to a lane-dense slab
    # (unweighted path) to avoid masked vst; not needed for standard heatmaps.

    kernel = _make_kernel(tr=tr, hw=HW, out_w=out_w, r=R,
                          need_mask=need_mask, use_weight=use_target_weight)

    data_specs = [
        pl.BlockSpec((tr, HW), lambda i: (i, 0)),   # pred rows
        pl.BlockSpec((tr, HW), lambda i: (i, 0)),   # gt rows
    ]

    if use_target_weight:
        w = target_weight.reshape(R, 1)
        if r_pad != R:
            w = jnp.pad(w, ((0, r_pad - R), (0, 0)))   # tiny; zeros contribute nothing
        in_specs = [pl.BlockSpec((tr, 1), lambda i: (i, 0))] + data_specs
        args = (w, pred, gt)
        w_bytes = r_pad * jnp.dtype(w.dtype).itemsize
    else:
        in_specs = data_specs
        args = (pred, gt)
        w_bytes = 0

    out_bytes = num_blocks * 8 * out_w * 4
    cost = pl.CostEstimate(
        flops=5 * R * HW,
        transcendentals=0,
        bytes_accessed=2 * R * HW * itemsize + w_bytes + out_bytes,
    )

    partials = pl.pallas_call(
        kernel,
        out_shape=jax.ShapeDtypeStruct((num_blocks, 8, out_w), jnp.float32),
        grid_spec=pltpu.PrefetchScalarGridSpec(
            num_scalar_prefetch=0,
            grid=(num_blocks,),
            in_specs=in_specs,
            out_specs=pl.BlockSpec((1, 8, out_w), lambda i: (i, 0, 0)),
        ),
        compiler_params=pltpu.CompilerParams(
            dimension_semantics=("parallel",),
            vmem_limit_bytes=32 << 20,
        ),
        cost_estimate=cost,
    )(*args)

    # loss = (1/J) * sum_j 0.5 * mean_{b,hw} (w*(pred-gt))^2
    scale = 0.5 / float(J * B * HW)
    return jnp.sum(partials) * jnp.float32(scale)


def _reference_loss(output, target, target_weight, use_target_weight=True):
    B, J, H, W = output.shape
    pred = output.reshape(B, J, -1)
    gt = target.reshape(B, J, -1)
    loss = 0.0
    for idx in range(J):
        hp = pred[:, idx, :]
        hg = gt[:, idx, :]
        if use_target_weight:
            w = target_weight[:, idx]  # (B, 1)
            hp = hp * w
            hg = hg * w
        loss += 0.5 * jnp.mean((hp - hg) ** 2)
    return loss / J


if __name__ == "__main__":
    key = jax.random.PRNGKey(0)
    k1, k2, k3 = jax.random.split(key, 3)

    B, J, H, W = 2, 4, 16, 16
    output = jax.random.normal(k1, (B, J, H, W), dtype=jnp.float32)
    target = jax.random.normal(k2, (B, J, H, W), dtype=jnp.float32)
    target_weight = jax.random.uniform(k3, (B, J, 1), dtype=jnp.float32)

    # Weighted variant.
    loss_w = joints_mse_loss(output, target, target_weight, use_target_weight=True)
    loss_w = jax.block_until_ready(loss_w)
    ref_w = _reference_loss(output, target, target_weight, use_target_weight=True)
    assert jnp.allclose(loss_w, ref_w, rtol=1e-5, atol=1e-6), (loss_w, ref_w)

    # Unweighted specialization (no weight input / multiply in the kernel).
    loss_u = joints_mse_loss(output, target, None, use_target_weight=False)
    loss_u = jax.block_until_ready(loss_u)
    ref_u = _reference_loss(output, target, target_weight, use_target_weight=False)
    assert jnp.allclose(loss_u, ref_u, rtol=1e-5, atol=1e-6), (loss_u, ref_u)

    print("KERNEL_OK")
</pallas_src>

<mosaic_0001>
module attributes {stable_mosaic.version = 11 : i64} {
  func.func @kernel(%arg0: i32, %arg1: memref<8x1xf32, #tpu.memory_space<vmem>>, %arg2: memref<8x256xf32, #tpu.memory_space<vmem>>, %arg3: memref<8x256xf32, #tpu.memory_space<vmem>>, %arg4: memref<1x8x128xf32, #tpu.memory_space<vmem>>) attributes {dimension_semantics = [#tpu.dimension_semantics<parallel>], iteration_bounds = array<i64: 1>, scalar_prefetch = 0 : i64, scratch_operands = 0 : i64, tpu.core_type = #tpu.core_type<tc>, window_params = [{transform_indices = @transform_0, window_bounds = array<i64: 8, 1>}, {transform_indices = @transform_1, window_bounds = array<i64: 8, 256>}, {transform_indices = @transform_2, window_bounds = array<i64: 8, 256>}, {transform_indices = @transform_3, window_bounds = array<i64: 1, 8, 128>}]} {
    %c0 = arith.constant 0 : index
    %c0_0 = arith.constant 0 : index
    %0 = vector.load %arg2[%c0, %c0_0] : memref<8x256xf32, #tpu.memory_space<vmem>>, vector<8x256xf32>
    %c0_1 = arith.constant 0 : index
    %c0_2 = arith.constant 0 : index
    %1 = vector.load %arg3[%c0_1, %c0_2] : memref<8x256xf32, #tpu.memory_space<vmem>>, vector<8x256xf32>
    %2 = arith.subf %0, %1 : vector<8x256xf32>
    %c0_3 = arith.constant 0 : index
    %c0_4 = arith.constant 0 : index
    %3 = vector.load %arg1[%c0_3, %c0_4] : memref<8x1xf32, #tpu.memory_space<vmem>>, vector<8x1xf32>
    %4 = vector.broadcast %3 : vector<8x1xf32> to vector<8x256xf32>
    %5 = arith.mulf %2, %4 : vector<8x256xf32>
    %6 = arith.mulf %5, %5 : vector<8x256xf32>
    %7 = vector.shape_cast %6 : vector<8x256xf32> to vector<1x8x256xf32>
    %cst = arith.constant dense<0.000000e+00> : vector<8x256xf32>
    %8 = vector.multi_reduction <add>, %7, %cst [0] : vector<1x8x256xf32> to vector<8x256xf32>
    %9 = vector.extract_strided_slice %8 {offsets = [0, 0], sizes = [8, 128], strides = [1, 1]} : vector<8x256xf32> to vector<8x128xf32>
    %10 = vector.extract_strided_slice %8 {offsets = [0, 128], sizes = [8, 128], strides = [1, 1]} : vector<8x256xf32> to vector<8x128xf32>
    %11 = arith.addf %9, %10 : vector<8x128xf32>
    %12 = vector.shape_cast %11 : vector<8x128xf32> to vector<1x8x128xf32>
    %c0_5 = arith.constant 0 : index
    %c0_6 = arith.constant 0 : index
    %c0_7 = arith.constant 0 : index
    %13 = vector.load %arg4[%c0_5, %c0_6, %c0_7] : memref<1x8x128xf32, #tpu.memory_space<vmem>>, vector<1x8x128xf32>
    tpu.vector_store %arg4[%c0_5, %c0_6, %c0_7], %12 {strides = array<i32>} : memref<1x8x128xf32, #tpu.memory_space<vmem>>, vector<1x8x128xf32>,
    return
  }
  func.func @transform_0(%arg0: i32) -> (i32, i32) {
    %c0_i32 = arith.constant 0 : i32
    %c0_i32_0 = arith.constant 0 : i32
    return %arg0, %c0_i32 : i32, i32
  }
  func.func @transform_1(%arg0: i32) -> (i32, i32) {
    %c0_i32 = arith.constant 0 : i32
    %c0_i32_0 = arith.constant 0 : i32
    return %arg0, %c0_i32 : i32, i32
  }
  func.func @transform_2(%arg0: i32) -> (i32, i32) {
    %c0_i32 = arith.constant 0 : i32
    %c0_i32_0 = arith.constant 0 : i32
    return %arg0, %c0_i32 : i32, i32
  }
  func.func @transform_3(%arg0: i32) -> (i32, i32, i32) {
    %c0_i32 = arith.constant 0 : i32
    %c0_i32_0 = arith.constant 0 : i32
    %c0_i32_1 = arith.constant 0 : i32
    return %arg0, %c0_i32, %c0_i32_0 : i32, i32, i32
  }
}

</mosaic_0001>

<llo_original>
// kernel: tpu_custom_call.1
$region0: #{tpu_custom_call.1}
  #allocation0 [shape = 'u32[]', space=smem, size = 0x4, offset = 0x4, fixed_abs, tag = 'smem constant byte address 0x4 - core index']
  #allocation1 [shape = 'u32[144,128]{1,0:T(1,128)}', space=vmem, size = 0x12000, scoped, tag = 'internal scratch']
  %s0 = inlined_call_operand.vmem [shape: f32[8,1], index: 0, kind: input, shape index: {}]
  %s1 = inlined_call_operand.hbm [shape: f32[8,256], index: 1, kind: input, shape index: {}]
  %s2 = inlined_call_operand.hbm [shape: f32[8,256], index: 2, kind: input, shape index: {}]
  %s3 = inlined_call_operand.hbm [shape: f32[1,8,128], index: 3, kind: output, shape index: {}]
  %s4 = sld [smem:[#allocation0]]
  $region30: #{tpu_custom_call.1} parent=0
    _
  %s6 = ssub.s32 1, %s4
  %s7 = scalar_select 0, %s6, %s4
  $region1: #{tpu_custom_call.1} parent=0
    #allocation2 [shape = 'u8[8192]{0}', space=vmem, size = 0x2000, scoped, tag = 'input window, operand 1, single buffered']
    #allocation3 [shape = 's32[1]{0}', space=sflag, size = 0x4, scoped, tag = 'scoped memory for tpu_custom_call.1']
    #allocation4 [shape = 's32[1]{0}', space=sflag, size = 0x4, scoped, tag = 'scoped memory for tpu_custom_call.1']
    #allocation5 [shape = 'u8[8192]{0}', space=vmem, size = 0x2000, scoped, tag = 'input window, operand 2, single buffered']
    #allocation6 [shape = 's32[1]{0}', space=sflag, size = 0x4, scoped, tag = 'scoped memory for tpu_custom_call.1']
    #allocation7 [shape = 'u8[4096]{0}', space=vmem, size = 0x1000, scoped, tag = 'output window, operand 0, single buffered']
    %8 = vsyncpa [#allocation3], 0
    %9 = vsyncpa [#allocation6], 0
    %10 = vsyncpa [#allocation4], 0
    // Predicated region
    $region2: #{tpu_custom_call.1} parent=1 // pred_check
      _
    $region3: #{tpu_custom_call.1} parent=1 // pred_check_branch
      %12 = sbr.rel (0) target = $region5
    $region4: #{tpu_custom_call.1} parent=1 // pred_region
      _
    $region5: #{tpu_custom_call.1} parent=1 // pred_fallthru
      _
    // Predicated region
    $region6: #{tpu_custom_call.1} parent=1 // pred_check
      _
    $region7: #{tpu_custom_call.1} parent=1 // pred_check_branch
      %14 = sbr.rel (0) target = $region9
    $region8: #{tpu_custom_call.1} parent=1 // pred_region
      %s16 = ssub.s32 256, 256
      %17 = vsyncadd [#allocation3], %s16
      %s19 = sshll.u32 [#allocation2], 4
      %s20 = int_to_ptr.vmem [resolvable:$true] %s19
      %22 = dma.hbm_to_vmem [thread:$0]  %s1, 256, %s20, [#allocation3]
    $region9: #{tpu_custom_call.1} parent=1 // pred_fallthru
      _
    // Predicated region
    $region10: #{tpu_custom_call.1} parent=1 // pred_check
      _
    $region11: #{tpu_custom_call.1} parent=1 // pred_check_branch
      %24 = sbr.rel (0) target = $region13
    $region12: #{tpu_custom_call.1} parent=1 // pred_region
      %s26 = ssub.s32 256, 256
      %27 = vsyncadd [#allocation6], %s26
      %s29 = sshll.u32 [#allocation5], 4
      %s30 = int_to_ptr.vmem [resolvable:$true] %s29
      %32 = dma.hbm_to_vmem [thread:$0]  %s2, 256, %s30, [#allocation6]
    $region13: #{tpu_custom_call.1} parent=1 // pred_fallthru
      _
    // Predicated region
    $region14: #{tpu_custom_call.1} parent=1 // pred_check
      _
    $region15: #{tpu_custom_call.1} parent=1 // pred_check_branch
      %34 = sbr.rel (0) target = $region17
    $region16: #{tpu_custom_call.1} parent=1 // pred_region
      %35 = dma.done [#allocation3], 256
    $region17: #{tpu_custom_call.1} parent=1 // pred_fallthru
      _
    // Predicated region
    $region18: #{tpu_custom_call.1} parent=1 // pred_check
      _
    $region19: #{tpu_custom_call.1} parent=1 // pred_check_branch
      %37 = sbr.rel (0) target = $region21
    $region20: #{tpu_custom_call.1} parent=1 // pred_region
      %38 = dma.done [#allocation6], 256
    $region21: #{tpu_custom_call.1} parent=1 // pred_fallthru
      _
    %v39 = vld [vmem:[#allocation2] sm:$0xff]
    %v40 = vld [vmem:[#allocation2 + $0x8] sm:$0xff]
    %v41 = vld [vmem:[#allocation5] sm:$0xff]
    %v42 = vld [vmem:[#allocation5 + $0x8] sm:$0xff]
    %v43 = vsub.f32 %v39, %v41
    %v44 = vsub.f32 %v40, %v42
    %v45 = vld [vmem:[%s0] sm:$0xff]
    %47 = vset.pattern.permute.xlu0 0
    %48 = vperm.xlu0 %47, %v45
    %v49 = vpop.permute.xlu0 %48
    %v51 = vmul.f32 %v43, %v49
    %v52 = vmul.f32 %v44, %v49
    %v53 = vmul.f32 %v51, %v51
    %v54 = vmul.f32 %v52, %v52
    %v55 = vadd.f32 %v53, 0.0
    %v56 = vadd.f32 %v54, 0.0
    %v57 = vadd.f32 %v55, %v56
    %58 = vst [vmem:[#allocation7] sm:$0xff] %v57
    // Predicated region
    $region22: #{tpu_custom_call.1} parent=1 // pred_check
      _
    $region23: #{tpu_custom_call.1} parent=1 // pred_check_branch
      %60 = sbr.rel (0) target = $region25
    $region24: #{tpu_custom_call.1} parent=1 // pred_region
      %s62 = ssub.s32 128, 128
      %63 = vsyncadd [#allocation4], %s62
      %s65 = sshll.u32 [#allocation7], 4
      %s66 = int_to_ptr.vmem [resolvable:$true] %s65
      %68 = dma.vmem_to_hbm [thread:$0]  %s66, 128, %s3, [#allocation4]
    $region25: #{tpu_custom_call.1} parent=1 // pred_fallthru
      _
    // Predicated region
    $region26: #{tpu_custom_call.1} parent=1 // pred_check
      _
    $region27: #{tpu_custom_call.1} parent=1 // pred_check_branch
      %70 = sbr.rel (0) target = $region29
    $region28: #{tpu_custom_call.1} parent=1 // pred_region
      %71 = dma.done [#allocation4], 128
    $region29: #{tpu_custom_call.1} parent=1 // pred_fallthru
      _
    %72 = vsyncpa [#allocation3], 1
    %73 = vsyncpa [#allocation6], 1
    %74 = vsyncpa [#allocation4], 1

</llo_original>
